<compile_context>
chip_gen: v7x
topology: tpu7x:2x2x1
jax: 0.10.0
libtpu: 0.0.40
codegen_flags: <defaults>
</compile_context>

<pallas_src>
import numpy as np
import jax
import jax.numpy as jnp
from jax.experimental import pallas as pl
from jax.experimental.pallas import tpu as pltpu

_EPS = 1e-6
_LANE = 128
_MAX_B_TILE = 8192  # lanes per grid step; ~3 MiB double-buffered input in VMEM

_DEFAULT_CFGS = dict(
    thumb_cmc=['+-:45', '+:45,-:15', '+:45,-:0'],
    thumb_mcp=['+-:0', '+-:10', '+:90,-:0'],
    thumb_pip=['+-:0', '+-:0', '+:90,-:0'],
    finger_mcp=['+-:0', '+-:5', '+:90,-:0'],
    finger_pip=['+-:0', '+-:0', '+:90,-:0'],
    finger_dip=['+-:0', '+-:0', '+:90,-:0'],
)

# Joint gather order matching torch.cat([...], dim=1) in the reference forward.
_JOINT_ORDER = np.array([1, 4, 10, 7,    # finger MCPs
                         2, 5, 11, 8,    # finger PIPs
                         3, 6, 12, 9,    # finger DIPs
                         13, 14, 15],    # thumb CMC / MCP / PIP
                        dtype=np.int32)
_NJ = int(_JOINT_ORDER.shape[0])


def _parse_axis_cfg(cfg):
    """Parse one axis config string -> (pos_tol_rad, neg_tol_rad)."""
    if '+-' in cfg:
        tol = float(cfg.split(':')[1]) / 180.0 * np.pi
        return tol, tol
    pos_cfg, neg_cfg = cfg.split(',')
    pos_tol = float(pos_cfg.split(':')[1]) / 180.0 * np.pi
    neg_tol = float(neg_cfg.split(':')[1]) / 180.0 * np.pi
    return pos_tol, neg_tol


def _build_tolerances(cfgs=_DEFAULT_CFGS):
    """Per-(axis, joint) tolerance tables, shape (3, NJ, 1) float32."""
    joint_cfgs = ([cfgs['finger_mcp']] * 4 + [cfgs['finger_pip']] * 4 +
                  [cfgs['finger_dip']] * 4 +
                  [cfgs['thumb_cmc'], cfgs['thumb_mcp'], cfgs['thumb_pip']])
    pos = np.zeros((3, _NJ, 1), np.float32)
    neg = np.zeros((3, _NJ, 1), np.float32)
    for j, jc in enumerate(joint_cfgs):
        for a, c in enumerate(jc):
            p, n = _parse_axis_cfg(c)
            pos[a, j, 0] = p
            neg[a, j, 0] = n
    return pos, neg


def _ceil_to(x, m):
    return ((x + m - 1) // m) * m


# ----------------------------- kernel bodies --------------------------------
def _per_axis_loss(ee, pos, neg):
    """ee: (3, NJ, Bt); pos/neg: (3, NJ, 1) lane-broadcast. -> (3, NJ, Bt)."""
    abs_ee = jnp.abs(ee)
    tol = jnp.where(ee < 0.0, neg, pos)
    return jnp.where(abs_ee > _EPS, jnp.maximum(abs_ee - tol, 0.0), 0.0)


def _none_kernel(ee_ref, pos_ref, neg_ref, loss_ref):
    per_axis = _per_axis_loss(ee_ref[...], pos_ref[...], neg_ref[...])
    loss_ref[...] = jnp.sum(per_axis, axis=0)          # (NJ, Bt), lane-dense


def _reduce_kernel(ee_ref, pos_ref, neg_ref, part_ref):
    per_axis = _per_axis_loss(ee_ref[...], pos_ref[...], neg_ref[...])
    partial = jnp.sum(per_axis)                        # scalar per tile
    part_ref[...] = jnp.broadcast_to(partial, (1, 8, 128))


# ------------------------------- wrapper -------------------------------------
def anatomy_constraint_loss_ee(euler_angles, reduction='mean'):
    """euler_angles: (B, 16, 3) float32. Returns scalar (mean/sum) or (B, 15)."""
    if reduction not in ('mean', 'sum', 'none'):
        raise ValueError('Unknown reduction type.')
    euler = euler_angles.astype(jnp.float32)
    B = int(euler.shape[0])

    # Host-side glue: one transpose + static row gather -> (3, NJ, B), B on lanes.
    ee_k = jnp.transpose(euler, (2, 1, 0))[:, _JOINT_ORDER, :]   # (3, NJ, B)

    # Tile the batch (lane) axis.
    b128 = _ceil_to(max(B, 1), _LANE)
    grid_b = -(-b128 // _MAX_B_TILE)                 # number of grid steps
    b_tile = _ceil_to(-(-b128 // grid_b), _LANE)     # lanes per step, mult of 128
    b_pad = grid_b * b_tile
    if b_pad != B:
        ee_k = jnp.pad(ee_k, ((0, 0), (0, 0), (0, b_pad - B)))

    pos_k, neg_k = _build_tolerances()               # (3, NJ, 1) numpy
    pos_k = jnp.asarray(pos_k)
    neg_k = jnp.asarray(neg_k)

    ee_spec = pl.BlockSpec((3, _NJ, b_tile), lambda i: (0, 0, i))
    tol_spec = pl.BlockSpec((3, _NJ, 1), lambda i: (0, 0, 0))
    cparams = pltpu.CompilerParams(
        dimension_semantics=("parallel",),           # megacore sharding on v7x
        vmem_limit_bytes=32 * 1024 * 1024)

    if reduction == 'none':
        loss = pl.pallas_call(
            _none_kernel,
            grid=(grid_b,),
            out_shape=jax.ShapeDtypeStruct((_NJ, b_pad), jnp.float32),
            in_specs=[ee_spec, tol_spec, tol_spec],
            out_specs=pl.BlockSpec((_NJ, b_tile), lambda i: (0, i)),
            compiler_params=cparams,
        )(ee_k, pos_k, neg_k)
        return jnp.transpose(loss[:, :B], (1, 0))    # (B, NJ)

    partials = pl.pallas_call(
        _reduce_kernel,
        grid=(grid_b,),
        out_shape=jax.ShapeDtypeStruct((grid_b, 8, 128), jnp.float32),
        in_specs=[ee_spec, tol_spec, tol_spec],
        out_specs=pl.BlockSpec((1, 8, 128), lambda i: (i, 0, 0)),
        compiler_params=cparams,
    )(ee_k, pos_k, neg_k)

    total = jnp.sum(partials[:, 0, 0])               # tiny final reduce in XLA
    if reduction == 'mean':
        total = total / jnp.float32(B * _NJ)         # padding contributes 0
    return total


# ---------------- pure-JAX reference (mirrors the torch code) ----------------
def _ref_axis(ee, cfg):
    nz = (jnp.abs(ee) > _EPS).astype(jnp.float32)
    if '+-' in cfg:
        tol = float(cfg.split(':')[1]) / 180.0 * np.pi
        loss = jnp.maximum(jnp.abs(ee) - tol, 0.0)
    else:
        pos_cfg, neg_cfg = cfg.split(',')
        pos_tol = float(pos_cfg.split(':')[1]) / 180.0 * np.pi
        neg_tol = float(neg_cfg.split(':')[1]) / 180.0 * np.pi
        neg_mask = (ee < 0).astype(jnp.float32)
        loss = (jnp.maximum(-ee - neg_tol, 0.0) * neg_mask +
                jnp.maximum(ee - pos_tol, 0.0) * (1.0 - neg_mask))
    return loss * nz


def _ref_joint(ee, cfg):
    return (_ref_axis(ee[:, :, 0], cfg[0]) +
            _ref_axis(ee[:, :, 1], cfg[1]) +
            _ref_axis(ee[:, :, 2], cfg[2]))


def _reference(euler_angles, reduction='mean', cfgs=_DEFAULT_CFGS):
    ee = euler_angles.astype(jnp.float32)
    loss_all = jnp.concatenate([
        _ref_joint(ee[:, [1, 4, 10, 7]], cfgs['finger_mcp']),
        _ref_joint(ee[:, [2, 5, 11, 8]], cfgs['finger_pip']),
        _ref_joint(ee[:, [3, 6, 12, 9]], cfgs['finger_dip']),
        _ref_joint(ee[:, 13:14], cfgs['thumb_cmc']),
        _ref_joint(ee[:, 14:15], cfgs['thumb_mcp']),
        _ref_joint(ee[:, 15:], cfgs['thumb_pip']),
    ], axis=1)
    if reduction == 'none':
        return loss_all
    if reduction == 'mean':
        return jnp.mean(loss_all)
    return jnp.sum(loss_all)


if __name__ == "__main__":
    key = jax.random.PRNGKey(0)
    ok = True

    for B in (2, 333):   # 333 exercises lane padding of the batch axis
        k = jax.random.fold_in(key, B)
        # Euler angles in radians; scale so some exceed the anatomical limits.
        euler = jax.random.normal(k, (B, 16, 3), dtype=jnp.float32) * 0.8

        out_mean = jax.block_until_ready(anatomy_constraint_loss_ee(euler, 'mean'))
        out_sum = jax.block_until_ready(anatomy_constraint_loss_ee(euler, 'sum'))
        out_none = jax.block_until_ready(anatomy_constraint_loss_ee(euler, 'none'))

        ref_mean = _reference(euler, 'mean')
        ref_sum = _reference(euler, 'sum')
        ref_none = _reference(euler, 'none')

        ok &= np.allclose(np.asarray(out_mean), np.asarray(ref_mean), atol=1e-5)
        ok &= np.allclose(np.asarray(out_sum), np.asarray(ref_sum), atol=1e-4)
        ok &= np.allclose(np.asarray(out_none), np.asarray(ref_none), atol=1e-5)

    assert ok
    print("KERNEL_OK")
</pallas_src>

<mosaic_0001>
module attributes {stable_mosaic.version = 11 : i64} {
  func.func @_reduce_kernel(%arg0: i32, %arg1: memref<3x15x128xf32, #tpu.memory_space<vmem>>, %arg2: memref<3x15x1xf32, #tpu.memory_space<vmem>>, %arg3: memref<3x15x1xf32, #tpu.memory_space<vmem>>, %arg4: memref<1x8x128xf32, #tpu.memory_space<vmem>>) attributes {dimension_semantics = [#tpu.dimension_semantics<parallel>], iteration_bounds = array<i64: 1>, scalar_prefetch = 0 : i64, scratch_operands = 0 : i64, tpu.core_type = #tpu.core_type<tc>, window_params = [{transform_indices = @transform_0, window_bounds = array<i64: 3, 15, 128>}, {pipeline_mode = #tpu.pipeline_mode<synchronous>, transform_indices = @transform_1, window_bounds = array<i64: 3, 15, 1>}, {pipeline_mode = #tpu.pipeline_mode<synchronous>, transform_indices = @transform_2, window_bounds = array<i64: 3, 15, 1>}, {transform_indices = @transform_3, window_bounds = array<i64: 1, 8, 128>}]} {
    %c0 = arith.constant 0 : index
    %c0_0 = arith.constant 0 : index
    %c0_1 = arith.constant 0 : index
    %0 = vector.load %arg1[%c0, %c0_0, %c0_1] : memref<3x15x128xf32, #tpu.memory_space<vmem>>, vector<3x15x128xf32>
    %c0_2 = arith.constant 0 : index
    %c0_3 = arith.constant 0 : index
    %c0_4 = arith.constant 0 : index
    %1 = vector.load %arg2[%c0_2, %c0_3, %c0_4] : memref<3x15x1xf32, #tpu.memory_space<vmem>>, vector<3x15x1xf32>
    %c0_5 = arith.constant 0 : index
    %c0_6 = arith.constant 0 : index
    %c0_7 = arith.constant 0 : index
    %2 = vector.load %arg3[%c0_5, %c0_6, %c0_7] : memref<3x15x1xf32, #tpu.memory_space<vmem>>, vector<3x15x1xf32>
    %3 = math.absf %0 : vector<3x15x128xf32>
    %cst = arith.constant 0.000000e+00 : f32
    %4 = vector.broadcast %cst : f32 to vector<3x15x128xf32>
    %5 = arith.cmpf olt, %0, %4 : vector<3x15x128xf32>
    %6 = vector.shape_cast %2 : vector<3x15x1xf32> to vector<3x15x1xf32>
    %7 = vector.broadcast %6 : vector<3x15x1xf32> to vector<3x15x128xf32>
    %8 = vector.shape_cast %1 : vector<3x15x1xf32> to vector<3x15x1xf32>
    %9 = vector.broadcast %8 : vector<3x15x1xf32> to vector<3x15x128xf32>
    %10 = arith.select %5, %7, %9 : vector<3x15x128xi1>, vector<3x15x128xf32>
    %cst_8 = arith.constant 9.99999997E-7 : f32
    %11 = vector.broadcast %cst_8 : f32 to vector<3x15x128xf32>
    %12 = arith.cmpf ogt, %3, %11 : vector<3x15x128xf32>
    %13 = arith.subf %3, %10 : vector<3x15x128xf32>
    %cst_9 = arith.constant 0.000000e+00 : f32
    %14 = vector.broadcast %cst_9 : f32 to vector<3x15x128xf32>
    %15 = arith.maximumf %13, %14 : vector<3x15x128xf32>
    %cst_10 = arith.constant 0.000000e+00 : f32
    %16 = vector.broadcast %cst_10 : f32 to vector<3x15x128xf32>
    %17 = arith.select %12, %15, %16 : vector<3x15x128xi1>, vector<3x15x128xf32>
    %18 = vector.shape_cast %17 : vector<3x15x128xf32> to vector<1x3x15x128xf32>
    %cst_11 = arith.constant dense<0.000000e+00> : vector<1xf32>
    %19 = vector.multi_reduction <add>, %18, %cst_11 [1, 2, 3] : vector<1x3x15x128xf32> to vector<1xf32>
    %20 = vector.shape_cast %19 : vector<1xf32> to vector<1x1x1x1xf32>
    %21 = vector.extract %20[0, 0, 0, 0] : f32 from vector<1x1x1x1xf32>
    %22 = vector.broadcast %21 : f32 to vector<1x8x128xf32>
    %c0_12 = arith.constant 0 : index
    %c0_13 = arith.constant 0 : index
    %c0_14 = arith.constant 0 : index
    %23 = vector.load %arg4[%c0_12, %c0_13, %c0_14] : memref<1x8x128xf32, #tpu.memory_space<vmem>>, vector<1x8x128xf32>
    tpu.vector_store %arg4[%c0_12, %c0_13, %c0_14], %22 {strides = array<i32>} : memref<1x8x128xf32, #tpu.memory_space<vmem>>, vector<1x8x128xf32>,
    return
  }
  func.func @transform_0(%arg0: i32) -> (i32, i32, i32) {
    %c0_i32 = arith.constant 0 : i32
    %c0_i32_0 = arith.constant 0 : i32
    %c0_i32_1 = arith.constant 0 : i32
    return %c0_i32, %c0_i32_0, %arg0 : i32, i32, i32
  }
  func.func @transform_1(%arg0: i32) -> (i32, i32, i32) {
    %c0_i32 = arith.constant 0 : i32
    %c0_i32_0 = arith.constant 0 : i32
    %c0_i32_1 = arith.constant 0 : i32
    %c0_i32_2 = arith.constant 0 : i32
    return %c0_i32, %c0_i32_0, %c0_i32_1 : i32, i32, i32
  }
  func.func @transform_2(%arg0: i32) -> (i32, i32, i32) {
    %c0_i32 = arith.constant 0 : i32
    %c0_i32_0 = arith.constant 0 : i32
    %c0_i32_1 = arith.constant 0 : i32
    %c0_i32_2 = arith.constant 0 : i32
    return %c0_i32, %c0_i32_0, %c0_i32_1 : i32, i32, i32
  }
  func.func @transform_3(%arg0: i32) -> (i32, i32, i32) {
    %c0_i32 = arith.constant 0 : i32
    %c0_i32_0 = arith.constant 0 : i32
    %c0_i32_1 = arith.constant 0 : i32
    return %arg0, %c0_i32, %c0_i32_0 : i32, i32, i32
  }
}

</mosaic_0001>

<llo_original>
// kernel: tpu_custom_call.1
$region0: #{tpu_custom_call.1}
  #allocation0 [shape = 'u32[]', space=smem, size = 0x4, offset = 0x4, fixed_abs, tag = 'smem constant byte address 0x4 - core index']
  #allocation1 [shape = 'u32[144,128]{1,0:T(1,128)}', space=vmem, size = 0x12000, scoped, tag = 'internal scratch']
  %s0 = inlined_call_operand.vmem [shape: f32[3,15,128], index: 0, kind: input, shape index: {}]
  %s1 = inlined_call_operand.vmem [shape: f32[3,15,1], index: 1, kind: input, shape index: {}]
  %s2 = inlined_call_operand.vmem [shape: f32[3,15,1], index: 2, kind: input, shape index: {}]
  %s3 = inlined_call_operand.hbm [shape: f32[1,8,128], index: 3, kind: output, shape index: {}]
  %s4 = sld [smem:[#allocation0]]
  $region22: #{tpu_custom_call.1} parent=0
    _
  %s6 = ssub.s32 1, %s4
  %s7 = scalar_select 0, %s6, %s4
  $region1: #{tpu_custom_call.1} parent=0
    #allocation2 [shape = 'u8[4096]{0}', space=vmem, size = 0x1000, scoped, tag = 'output window, operand 0, single buffered']
    #allocation3 [shape = 's32[1]{0}', space=sflag, size = 0x4, scoped, tag = 'scoped memory for tpu_custom_call.1']
    %8 = vsyncpa [#allocation3], 0
    // Predicated region
    $region2: #{tpu_custom_call.1} parent=1 // pred_check
      _
    $region3: #{tpu_custom_call.1} parent=1 // pred_check_branch
      %10 = sbr.rel (0) target = $region5
    $region4: #{tpu_custom_call.1} parent=1 // pred_region
      _
    $region5: #{tpu_custom_call.1} parent=1 // pred_fallthru
      _
    // Predicated region
    $region6: #{tpu_custom_call.1} parent=1 // pred_check
      _
    $region7: #{tpu_custom_call.1} parent=1 // pred_check_branch
      %12 = sbr.rel (0) target = $region9
    $region8: #{tpu_custom_call.1} parent=1 // pred_region
      _
    $region9: #{tpu_custom_call.1} parent=1 // pred_fallthru
      _
    // Predicated region
    $region10: #{tpu_custom_call.1} parent=1 // pred_check
      _
    $region11: #{tpu_custom_call.1} parent=1 // pred_check_branch
      %14 = sbr.rel (0) target = $region13
    $region12: #{tpu_custom_call.1} parent=1 // pred_region
      _
    $region13: #{tpu_custom_call.1} parent=1 // pred_fallthru
      _
    %v15 = vld [vmem:[%s0] sm:$0xff]
    %v16 = vld [vmem:[%s0 + $0x8] sm:$0x7f]
    %v17 = vld [vmem:[%s0 + $0x10] sm:$0xff]
    %v18 = vld [vmem:[%s0 + $0x18] sm:$0x7f]
    %v19 = vld [vmem:[%s0 + $0x20] sm:$0xff]
    %v20 = vld [vmem:[%s0 + $0x28] sm:$0x7f]
    %v21 = vld [vmem:[%s1] sm:$0xff]
    %v22 = vld [vmem:[%s1 + $0x8] sm:$0x7f]
    %v23 = vld [vmem:[%s1 + $0x10] sm:$0xff]
    %v24 = vld [vmem:[%s1 + $0x18] sm:$0x7f]
    %v25 = vld [vmem:[%s1 + $0x20] sm:$0xff]
    %v26 = vld [vmem:[%s1 + $0x28] sm:$0x7f]
    %v27 = vld [vmem:[%s2] sm:$0xff]
    %v28 = vld [vmem:[%s2 + $0x8] sm:$0x7f]
    %v29 = vld [vmem:[%s2 + $0x10] sm:$0xff]
    %v30 = vld [vmem:[%s2 + $0x18] sm:$0x7f]
    %v31 = vld [vmem:[%s2 + $0x20] sm:$0xff]
    %v32 = vld [vmem:[%s2 + $0x28] sm:$0x7f]
    %v33 = vand.u32 2147483647, %v15
    %v34 = vand.u32 2147483647, %v16
    %v35 = vand.u32 2147483647, %v17
    %v36 = vand.u32 2147483647, %v18
    %v37 = vand.u32 2147483647, %v19
    %v38 = vand.u32 2147483647, %v20
    %vm39 = vcmp.lt.f32.partialorder %v15, 0.0
    %vm40 = vcmp.lt.f32.partialorder %v16, 0.0
    %vm41 = vcmp.lt.f32.partialorder %v17, 0.0
    %vm42 = vcmp.lt.f32.partialorder %v18, 0.0
    %vm43 = vcmp.lt.f32.partialorder %v19, 0.0
    %vm44 = vcmp.lt.f32.partialorder %v20, 0.0
    %46 = vset.pattern.permute.xlu0 0
    %47 = vperm.xlu0 %46, %v27
    %v48 = vpop.permute.xlu0 %47
    %51 = vset.pattern.permute.xlu0 0
    %52 = vperm.xlu0 %51, %v28
    %v53 = vpop.permute.xlu0 %52
    %56 = vset.pattern.permute.xlu0 0
    %57 = vperm.xlu0 %56, %v29
    %v58 = vpop.permute.xlu0 %57
    %61 = vset.pattern.permute.xlu0 0
    %62 = vperm.xlu0 %61, %v30
    %v63 = vpop.permute.xlu0 %62
    %66 = vset.pattern.permute.xlu0 0
    %67 = vperm.xlu0 %66, %v31
    %v68 = vpop.permute.xlu0 %67
    %71 = vset.pattern.permute.xlu0 0
    %72 = vperm.xlu0 %71, %v32
    %v73 = vpop.permute.xlu0 %72
    %76 = vset.pattern.permute.xlu0 0
    %77 = vperm.xlu0 %76, %v21
    %v78 = vpop.permute.xlu0 %77
    %81 = vset.pattern.permute.xlu0 0
    %82 = vperm.xlu0 %81, %v22
    %v83 = vpop.permute.xlu0 %82
    %86 = vset.pattern.permute.xlu0 0
    %87 = vperm.xlu0 %86, %v23
    %v88 = vpop.permute.xlu0 %87
    %91 = vset.pattern.permute.xlu0 0
    %92 = vperm.xlu0 %91, %v24
    %v93 = vpop.permute.xlu0 %92
    %96 = vset.pattern.permute.xlu0 0
    %97 = vperm.xlu0 %96, %v25
    %v98 = vpop.permute.xlu0 %97
    %101 = vset.pattern.permute.xlu0 0
    %102 = vperm.xlu0 %101, %v26
    %v103 = vpop.permute.xlu0 %102
    %v105 = vsel %vm39, %v48, %v78
    %v106 = vsel %vm40, %v53, %v83
    %v107 = vsel %vm41, %v58, %v88
    %v108 = vsel %vm42, %v63, %v93
    %v109 = vsel %vm43, %v68, %v98
    %v110 = vsel %vm44, %v73, %v103
    %vm111 = vcmp.gt.f32.partialorder %v33, 1e-06
    %vm112 = vcmp.gt.f32.partialorder %v34, 1e-06
    %vm113 = vcmp.gt.f32.partialorder %v35, 1e-06
    %vm114 = vcmp.gt.f32.partialorder %v36, 1e-06
    %vm115 = vcmp.gt.f32.partialorder %v37, 1e-06
    %vm116 = vcmp.gt.f32.partialorder %v38, 1e-06
    %v117 = vsub.f32 %v33, %v105
    %v118 = vsub.f32 %v34, %v106
    %v119 = vsub.f32 %v35, %v107
    %v120 = vsub.f32 %v36, %v108
    %v121 = vsub.f32 %v37, %v109
    %v122 = vsub.f32 %v38, %v110
    %v123 = vmax.f32 %v117, 0.0
    %v124 = vmax.f32 %v118, 0.0
    %v125 = vmax.f32 %v119, 0.0
    %v126 = vmax.f32 %v120, 0.0
    %v127 = vmax.f32 %v121, 0.0
    %v128 = vmax.f32 %v122, 0.0
    %v129 = vsel %vm111, %v123, 0.0
    %v130 = vsel %vm112, %v124, 0.0
    %v131 = vsel %vm113, %v125, 0.0
    %v132 = vsel %vm114, %v126, 0.0
    %v133 = vsel %vm115, %v127, 0.0
    %v134 = vsel %vm116, %v128, 0.0
    %vm135 = vcmask 1046528
    %v136 = vsel %vm135, %v130, 0.0
    %v137 = vadd.f32 %v129, %v136
    %v138 = vadd.f32 %v137, %v131
    %v139 = vsel %vm135, %v132, 0.0
    %v140 = vadd.f32 %v138, %v139
    %v141 = vadd.f32 %v140, %v133
    %v142 = vsel %vm135, %v134, 0.0
    %v143 = vadd.f32 %v141, %v142
    %144 = vadd.xlane.f32.xlu0 %v143
    %v145 = vpop.xlane.xlu0 %144
    %v146 = vrot.slane %v145, 4
    %v147 = vadd.f32 %v145, %v146
    %v148 = vrot.slane %v147, 2
    %v149 = vadd.f32 %v147, %v148
    %v150 = vrot.slane %v149, 1
    %v151 = vadd.f32 %v149, %v150
    %s152 = vtos %v151
    %v153 = vstv %s152
    %154 = vst [vmem:[#allocation2] sm:$0xff] %v153
    // Predicated region
    $region14: #{tpu_custom_call.1} parent=1 // pred_check
      _
    $region15: #{tpu_custom_call.1} parent=1 // pred_check_branch
      %156 = sbr.rel (0) target = $region17
    $region16: #{tpu_custom_call.1} parent=1 // pred_region
      %s158 = ssub.s32 128, 128
      %159 = vsyncadd [#allocation3], %s158
      %s161 = sshll.u32 [#allocation2], 4
      %s162 = int_to_ptr.vmem [resolvable:$true] %s161
      %164 = dma.vmem_to_hbm [thread:$0]  %s162, 128, %s3, [#allocation3]
    $region17: #{tpu_custom_call.1} parent=1 // pred_fallthru
      _
    // Predicated region
    $region18: #{tpu_custom_call.1} parent=1 // pred_check
      _
    $region19: #{tpu_custom_call.1} parent=1 // pred_check_branch
      %166 = sbr.rel (0) target = $region21
    $region20: #{tpu_custom_call.1} parent=1 // pred_region
      %167 = dma.done [#allocation3], 128
    $region21: #{tpu_custom_call.1} parent=1 // pred_fallthru
      _
    %168 = vsyncpa [#allocation3], 1

</llo_original>
